<compile_context>
chip_gen: v7x
topology: tpu7x:2x2x1
jax: 0.10.0
libtpu: 0.0.40
codegen_flags: <defaults>
</compile_context>

<pallas_src>
import jax
import jax.numpy as jnp
from jax import lax
from jax.experimental import pallas as pl
from jax.experimental.pallas import tpu as pltpu


def _conv_bn_relu_kernel(w_ref, x_ref, shift_ref, o_ref, acc_ref):
    # w_ref:     (Co, tk)  BN-scale-folded weight slab for this K tile
    # x_ref:     (tk, tm)  pixel-major activation tile (pixels on the lane axis)
    # shift_ref: (Co, 1)   folded BN shift (beta - mean*gamma/std), f32
    # o_ref:     (Co, tm)  lane-dense output tile
    # acc_ref:   (Co, tm)  f32 VMEM accumulator, persists across the K grid axis
    k = pl.program_id(2)

    @pl.when(k == 0)
    def _():
        acc_ref[...] = jnp.zeros_like(acc_ref)

    acc_ref[...] += jnp.dot(w_ref[...], x_ref[...],
                            preferred_element_type=jnp.float32)

    @pl.when(k == pl.num_programs(2) - 1)
    def _():
        y = acc_ref[...] + shift_ref[...]            # f32 epilogue, lane broadcast
        o_ref[...] = jnp.maximum(y, 0.0).astype(o_ref.dtype)


def _round_up(x, m):
    return ((x + m - 1) // m) * m


def _vmem_capacity_bytes():
    # Per-generation physical VMEM (v5e/v6e: 128 MiB, v7x: 64 MiB per TC).
    try:
        cap = getattr(pltpu.get_tpu_info(), "vmem_capacity_bytes", None)
        if cap:
            return int(cap)
    except Exception:
        pass
    return 64 * 1024 * 1024          # conservative (v7x) fallback


def _k_tile_options(K):
    # Prefer untiled K; otherwise 128-multiple divisors of K (largest first) so
    # the reduction axis never has a partial (garbage-contaminating) block.
    opts = [K]
    d = (K // 128) * 128
    while d >= 128:
        if d != K and K % d == 0:
            opts.append(d)
        d -= 128
    return opts


def _pick_tiles(M, K, Co, itemsize, budget):
    """Pick (tm, tk): keep the lane-dense pixel tile as large as possible,
    tiling K only when needed.  VMEM accounting counts double buffers for the
    activation/output streams AND for the (grid-invariant but still
    double-buffered) weight/shift slabs, plus the f32 accumulator scratch."""
    mp128 = _round_up(M, 128)

    def need(tm, tk):
        return ((2 * tm * tk + 2 * Co * tm + 2 * Co * tk + 2 * Co) * itemsize
                + Co * tm * 4)

    k_opts = _k_tile_options(K)
    for cand in (1024, 512, 256, 128):
        tm = min(cand, mp128)
        for tk in k_opts:
            if need(tm, tk) <= budget:
                return tm, tk
    return min(128, mp128), k_opts[-1]


def conv_bn_relu(x_nchw, weight, gamma, beta, running_mean, running_var,
                 *, stride=1, padding=0, eps=1e-5, matmul_dtype=None):
    """Fused Conv2d(bias=False) -> BatchNorm2d(inference stats) -> ReLU."""
    N, C, H, W = x_nchw.shape
    Co, Ci, KH, KW = weight.shape
    OH = (H + 2 * padding - KH) // stride + 1
    OW = (W + 2 * padding - KW) // stride + 1
    out_dtype = x_nchw.dtype
    # Optional bf16 matmul (v6e/v7x compute-bound layers); f32 accumulation either way.
    mm_dtype = jnp.dtype(matmul_dtype) if matmul_dtype is not None else jnp.dtype(out_dtype)

    # --- activations -> (N, K, OH*OW): channel-major features, pixels last ------
    if KH == 1 and KW == 1 and stride == 1 and padding == 0:
        K = Ci
        x3 = x_nchw.reshape(N, K, H * W)          # 1x1 fast path: zero-copy
    else:
        # TODO(synk): build the (K, tm) patch tile in-kernel from a padded-once NCHW
        # input (shifted DMA windows) instead of materializing im2col in HBM
        # (~KH*KW x extra activation traffic on 3x3 layers).
        patches = lax.conv_general_dilated_patches(
            x_nchw,
            filter_shape=(KH, KW),
            window_strides=(stride, stride),
            padding=[(padding, padding), (padding, padding)],
            dimension_numbers=("NCHW", "OIHW", "NCHW"),
        )
        # Feature ordering is (Ci, KH, KW), matching weight.reshape(Co, Ci*KH*KW).
        K = Ci * KH * KW
        x3 = patches.reshape(N, K, OH * OW)

    # --- fold BatchNorm (inference stats) into weights + per-channel shift ------
    inv_std = lax.rsqrt(running_var.astype(jnp.float32) + eps)
    scale = gamma.astype(jnp.float32) * inv_std                            # (Co,)
    shift = (beta.astype(jnp.float32)
             - running_mean.astype(jnp.float32) * scale).reshape(Co, 1)    # (Co,1) f32
    w_scaled = (weight.reshape(Co, K).astype(jnp.float32)
                * scale[:, None]).astype(mm_dtype)                         # (Co, K)

    # --- tiling -----------------------------------------------------------------
    M = OH * OW
    itemsize = jnp.dtype(mm_dtype).itemsize
    cap = _vmem_capacity_bytes()
    budget = min((cap * 2) // 5, 48 << 20)           # tile working-set budget
    tm, tk = _pick_tiles(M, K, Co, itemsize, budget)

    if M < 128:
        tm = M                                       # tiny maps: full-extent pixel block

    # v7x has 2 TensorCores fed by "parallel" grid axes: ensure >=2 parallel steps
    # when a single batch would otherwise fit in one pixel tile.
    if N == 1 and pl.cdiv(M, tm) == 1 and _round_up(M, 128) >= 256:
        tm = _round_up(pl.cdiv(_round_up(M, 128), 2), 128)

    nk = pl.cdiv(K, tk)                              # tk always divides K exactly
    grid = (N, pl.cdiv(M, tm), nk)

    working = ((2 * tm * tk + 2 * Co * tm + 2 * Co * tk + 2 * Co) * itemsize
               + Co * tm * 4)
    vmem_limit = int(min(max(2 * working, 32 << 20), (cap * 3) // 5))

    cost = pl.CostEstimate(
        flops=2 * N * M * K * Co,
        transcendentals=0,
        bytes_accessed=(itemsize * (N * M * K + Co * K)
                        + jnp.dtype(out_dtype).itemsize * N * M * Co + 4 * Co),
    )

    out = pl.pallas_call(
        _conv_bn_relu_kernel,
        out_shape=jax.ShapeDtypeStruct((N, Co, M), out_dtype),   # true M: no pad/slice passes
        grid=grid,
        in_specs=[
            pl.BlockSpec((Co, tk), lambda b, i, k: (0, k)),           # K-tiled weights
            pl.BlockSpec((None, tk, tm), lambda b, i, k: (b, k, i)),  # activation tile
            pl.BlockSpec((Co, 1), lambda b, i, k: (0, 0)),            # folded BN shift
        ],
        out_specs=pl.BlockSpec((None, Co, tm), lambda b, i, k: (b, 0, i)),
        scratch_shapes=[pltpu.VMEM((Co, tm), jnp.float32)],
        compiler_params=pltpu.CompilerParams(
            dimension_semantics=("parallel", "parallel", "arbitrary"),
            vmem_limit_bytes=vmem_limit,
        ),
        cost_estimate=cost,
    )(w_scaled, x3.astype(mm_dtype), shift)

    # (N, Co, M) maps straight back to NCHW (no transpose, no slicing).
    return out.reshape(N, Co, OH, OW)


def _reference(x, weight, gamma, beta, running_mean, running_var,
               *, stride=1, padding=0, eps=1e-5):
    y = lax.conv_general_dilated(
        x.astype(jnp.float32), weight.astype(jnp.float32),
        window_strides=(stride, stride),
        padding=[(padding, padding), (padding, padding)],
        dimension_numbers=("NCHW", "OIHW", "NCHW"),
        precision=lax.Precision.HIGHEST)
    inv_std = 1.0 / jnp.sqrt(running_var + eps)
    y = (y - running_mean[None, :, None, None]) * (gamma * inv_std)[None, :, None, None] \
        + beta[None, :, None, None]
    return jnp.maximum(y, 0.0)


if __name__ == "__main__":
    key = jax.random.PRNGKey(0)

    def make_case(ck, N, Cin, Cout, H, W, ks):
        kx, kw, kg, kb, km, kv = jax.random.split(ck, 6)
        x = jax.random.normal(kx, (N, Cin, H, W), dtype=jnp.float32)
        # kaiming_normal_(mode='fan_out'): std = sqrt(2 / (out_planes * kh * kw))
        fan_out = Cout * ks * ks
        weight = jax.random.normal(kw, (Cout, Cin, ks, ks),
                                   dtype=jnp.float32) * jnp.sqrt(2.0 / fan_out)
        # Non-trivial BN inference statistics to actually exercise the folding.
        gamma = 1.0 + 0.1 * jax.random.normal(kg, (Cout,), dtype=jnp.float32)
        beta = 0.1 * jax.random.normal(kb, (Cout,), dtype=jnp.float32)
        mean = 0.1 * jax.random.normal(km, (Cout,), dtype=jnp.float32)
        var = jnp.abs(jax.random.normal(kv, (Cout,), dtype=jnp.float32)) + 0.5
        return x, weight, gamma, beta, mean, var

    # TODO(synk): training-mode BN (batch statistics + running-stat update) not
    # implemented; inference mode only (matches module.eval()).
    cases = [
        # (N, Cin, Cout, H, W, ks, stride, padding)
        (2, 4, 8, 16, 16, 1, 1, 0),    # module defaults: 1x1 zero-copy fast path
        (1, 8, 16, 14, 14, 3, 1, 1),   # 3x3 pad=1 path, partial pixel tile, N==1 split
        (2, 4, 8, 24, 24, 3, 2, 1),    # strided 3x3, non-128-aligned pixel count
    ]

    keys = jax.random.split(key, len(cases))
    for cfg, ck in zip(cases, keys):
        N, Cin, Cout, H, W, ks, stride, padding = cfg
        x, weight, gamma, beta, mean, var = make_case(ck, N, Cin, Cout, H, W, ks)
        out = conv_bn_relu(x, weight, gamma, beta, mean, var,
                           stride=stride, padding=padding)
        out = jax.block_until_ready(out)
        ref = _reference(x, weight, gamma, beta, mean, var,
                         stride=stride, padding=padding)
        assert out.shape == ref.shape, (cfg, out.shape, ref.shape)
        assert jnp.allclose(out, ref, atol=1e-4, rtol=1e-4), f"mismatch vs reference: {cfg}"

    print("KERNEL_OK")
</pallas_src>

<mosaic_0001>
module attributes {stable_mosaic.version = 11 : i64} {
  func.func @_conv_bn_relu_kernel(%arg0: i32, %arg1: i32, %arg2: i32, %arg3: memref<8x4xf32, #tpu.memory_space<vmem>>, %arg4: memref<1x4x256xf32, #tpu.memory_space<vmem>>, %arg5: memref<8x1xf32, #tpu.memory_space<vmem>>, %arg6: memref<1x8x256xf32, #tpu.memory_space<vmem>>, %arg7: memref<8x256xf32, #tpu.memory_space<vmem>>) attributes {dimension_semantics = [#tpu.dimension_semantics<parallel>, #tpu.dimension_semantics<parallel>, #tpu.dimension_semantics<arbitrary>], iteration_bounds = array<i64: 2, 1, 1>, scalar_prefetch = 0 : i64, scratch_operands = 1 : i64, tpu.core_type = #tpu.core_type<tc>, window_params = [{transform_indices = @transform_0, window_bounds = array<i64: 8, 4>}, {transform_indices = @transform_1, window_bounds = array<i64: 1, 4, 256>}, {pipeline_mode = #tpu.pipeline_mode<synchronous>, transform_indices = @transform_2, window_bounds = array<i64: 8, 1>}, {transform_indices = @transform_3, window_bounds = array<i64: 1, 8, 256>}]} {
    %c0_i32 = arith.constant 0 : i32
    %0 = arith.cmpi eq, %arg2, %c0_i32 : i32
    %1 = arith.extui %0 : i1 to i32
    %c0_i32_0 = arith.constant 0 : i32
    %2 = arith.cmpi ne, %1, %c0_i32_0 : i32
    scf.if %2 {
      %cst_11 = arith.constant 0.000000e+00 : f32
      %13 = vector.broadcast %cst_11 : f32 to vector<8x256xf32>
      %c0_12 = arith.constant 0 : index
      %c0_13 = arith.constant 0 : index
      %14 = vector.load %arg7[%c0_12, %c0_13] : memref<8x256xf32, #tpu.memory_space<vmem>>, vector<8x256xf32>
      tpu.vector_store %arg7[%c0_12, %c0_13], %13 {strides = array<i32>} : memref<8x256xf32, #tpu.memory_space<vmem>>, vector<8x256xf32>,
    } else {
    }
    %c0 = arith.constant 0 : index
    %c0_1 = arith.constant 0 : index
    %3 = vector.load %arg7[%c0, %c0_1] : memref<8x256xf32, #tpu.memory_space<vmem>>, vector<8x256xf32>
    %c0_2 = arith.constant 0 : index
    %c0_3 = arith.constant 0 : index
    %4 = vector.load %arg3[%c0_2, %c0_3] : memref<8x4xf32, #tpu.memory_space<vmem>>, vector<8x4xf32>
    %c0_4 = arith.constant 0 : index
    %c0_5 = arith.constant 0 : index
    %c0_6 = arith.constant 0 : index
    %5 = vector.load %arg4[%c0_4, %c0_5, %c0_6] : memref<1x4x256xf32, #tpu.memory_space<vmem>>, vector<1x4x256xf32>
    %6 = vector.shape_cast %5 : vector<1x4x256xf32> to vector<4x256xf32>
    %cst = arith.constant dense<0.000000e+00> : vector<8x256xf32>
    %7 = tpu.matmul %4, %6, %cst {dimension_numbers = #tpu.dot_dimension_numbers<[1], [0], [0], [1], [0, 0, 1, 1], [], []>} : vector<8x4xf32>, vector<4x256xf32>, vector<8x256xf32> -> vector<8x256xf32>
    %8 = arith.addf %3, %7 : vector<8x256xf32>
    %c0_7 = arith.constant 0 : index
    %c0_8 = arith.constant 0 : index
    %9 = vector.load %arg7[%c0_7, %c0_8] : memref<8x256xf32, #tpu.memory_space<vmem>>, vector<8x256xf32>
    tpu.vector_store %arg7[%c0_7, %c0_8], %8 {strides = array<i32>} : memref<8x256xf32, #tpu.memory_space<vmem>>, vector<8x256xf32>,
    %c0_i32_9 = arith.constant 0 : i32
    %10 = arith.cmpi eq, %arg2, %c0_i32_9 : i32
    %11 = arith.extui %10 : i1 to i32
    %c0_i32_10 = arith.constant 0 : i32
    %12 = arith.cmpi ne, %11, %c0_i32_10 : i32
    scf.if %12 {
      %c0_11 = arith.constant 0 : index
      %c0_12 = arith.constant 0 : index
      %13 = vector.load %arg7[%c0_11, %c0_12] : memref<8x256xf32, #tpu.memory_space<vmem>>, vector<8x256xf32>
      %c0_13 = arith.constant 0 : index
      %c0_14 = arith.constant 0 : index
      %14 = vector.load %arg5[%c0_13, %c0_14] : memref<8x1xf32, #tpu.memory_space<vmem>>, vector<8x1xf32>
      %15 = vector.broadcast %14 : vector<8x1xf32> to vector<8x256xf32>
      %16 = arith.addf %13, %15 : vector<8x256xf32>
      %cst_15 = arith.constant 0.000000e+00 : f32
      %17 = vector.broadcast %cst_15 : f32 to vector<8x256xf32>
      %18 = arith.maximumf %16, %17 : vector<8x256xf32>
      %c0_16 = arith.constant 0 : index
      %c0_17 = arith.constant 0 : index
      %c0_18 = arith.constant 0 : index
      %19 = vector.load %arg6[%c0_16, %c0_17, %c0_18] : memref<1x8x256xf32, #tpu.memory_space<vmem>>, vector<1x8x256xf32>
      %20 = vector.shape_cast %19 : vector<1x8x256xf32> to vector<8x256xf32>
      %21 = vector.shape_cast %18 : vector<8x256xf32> to vector<1x8x256xf32>
      tpu.vector_store %arg6[%c0_16, %c0_17, %c0_18], %21 {strides = array<i32>} : memref<1x8x256xf32, #tpu.memory_space<vmem>>, vector<1x8x256xf32>,
    } else {
    }
    return
  }
  func.func @transform_0(%arg0: i32, %arg1: i32, %arg2: i32) -> (i32, i32) {
    %c0_i32 = arith.constant 0 : i32
    %c0_i32_0 = arith.constant 0 : i32
    return %c0_i32, %arg2 : i32, i32
  }
  func.func @transform_1(%arg0: i32, %arg1: i32, %arg2: i32) -> (i32, i32, i32) {
    %c0_i32 = arith.constant 0 : i32
    return %arg0, %arg2, %arg1 : i32, i32, i32
  }
  func.func @transform_2(%arg0: i32, %arg1: i32, %arg2: i32) -> (i32, i32) {
    %c0_i32 = arith.constant 0 : i32
    %c0_i32_0 = arith.constant 0 : i32
    %c0_i32_1 = arith.constant 0 : i32
    return %c0_i32, %c0_i32_0 : i32, i32
  }
  func.func @transform_3(%arg0: i32, %arg1: i32, %arg2: i32) -> (i32, i32, i32) {
    %c0_i32 = arith.constant 0 : i32
    %c0_i32_0 = arith.constant 0 : i32
    return %arg0, %c0_i32, %arg1 : i32, i32, i32
  }
}

</mosaic_0001>

<llo_original>
// kernel: tpu_custom_call.1
$region0: #{tpu_custom_call.1}
  #allocation0 [shape = 'u32[]', space=smem, size = 0x4, offset = 0x4, fixed_abs, tag = 'smem constant byte address 0x4 - core index']
  #allocation1 [shape = 'u32[144,128]{1,0:T(1,128)}', space=vmem, size = 0x12000, scoped, tag = 'internal scratch']
  #allocation2 [shape = 'f32[8,256]{1,0:T(8,128)}', space=vmem, size = 0x2000, scoped, tag = 'scratch operand']
  %s0 = inlined_call_operand.vmem [shape: f32[8,4], index: 0, kind: input, shape index: {}]
  %s1 = inlined_call_operand.vmem [shape: f32[2,4,256], index: 1, kind: input, shape index: {}]
  %s2 = inlined_call_operand.vmem [shape: f32[8,1], index: 2, kind: input, shape index: {}]
  %s3 = inlined_call_operand.hbm [shape: f32[2,8,256], index: 3, kind: output, shape index: {}]
  %s4 = sld [smem:[#allocation0]]
  $region53: #{tpu_custom_call.1} parent=0
    _
  %s6 = ssub.s32 1, %s4
  %s7 = scalar_select 0, %s6, %s4
  $region1: #{tpu_custom_call.1} parent=0
    #allocation3 [shape = 'u8[16384]{0}', space=vmem, size = 0x4000, scoped, tag = 'output window, operand 0']
    #allocation4 [shape = 's32[2]{0}', space=sflag, size = 0x8, scoped, tag = 'scoped memory for tpu_custom_call.1']
    %8 = vsyncpa [#allocation4], 0
    %s9 = scalar_lea.sflag [#allocation4], 1
    %10 = vsyncpa %s9, 0
    loop: start=0, step=1, limit=4
    $region2: #{tpu_custom_call.1} parent=1 // loop_pre_header
      _
    $region3: #{tpu_custom_call.1} parent=1 // loop_header
      %s12 = sphi 0, %s16
      %p13 = scmp.ge.s32.totalorder %s12, 4
      %s19 = sphi 0, %s38
      %s20 = sphi 0, %s34
      %s21 = sphi 0, %s30
      %s22 = sphi 0, %s19
      %s23 = sphi 0, %s20
      %s24 = sphi 0, %s21
      %s25 = sphi 0, %s22
      %s26 = sphi 0, %s23
      %s27 = sphi 0, %s24
      %s41 = sphi 0, %s43
      %s44 = sphi 0, %s41
      %s45 = sphi 0, %s44
      %s61 = sphi 0, %s45
      %s71 = sphi 0, %s73
      %s74 = sphi 0, %s71
      %s75 = sphi 0, %s74
      %s91 = sphi 0, %s75
      %s95 = sphi 0, %s95
      %s97 = sphi 0, %s95
      %s98 = sphi 0, %s97
      %s112 = sphi 0, %s98
      %s120 = sphi 0, %s122
      %s123 = sphi 0, %s120
      %s124 = sphi 0, %s123
      %s140 = sphi 0, %s124
    $region4: #{tpu_custom_call.1} parent=1 // loop_header_branch
      %15 = sbr.rel (%p13) target = $region8
    $region5: #{tpu_custom_call.1} parent=1 // loop_body
      %s17 = ssub.s32 %s12, 1
      %s18 = ssub.s32 %s12, 2
      %s28 = sadd.s32 1, %s21
      %p29 = scmp.ge.s32.totalorder %s28, 1
      %s30 = scalar_select %p29, 0, %s28
      %s31 = sadd.s32 1, %s20
      %s32 = scalar_select %p29, %s31, %s20
      %p33 = scmp.ge.s32.totalorder %s32, 1
      %s34 = scalar_select %p33, 0, %s32
      %s35 = sadd.s32 1, %s19
      %s36 = scalar_select %p33, %s35, %s19
      %p37 = scmp.ge.s32.totalorder %s36, 2
      %s38 = scalar_select %p37, 0, %s36
      %s39 = ssub.s32 %s21, %s30
      %p40 = scmp.eq.s32.totalorder %s39, 0
      %s42 = sadd.s32 %s41, 1
      %s43 = scalar_select %p40, %s41, %s42
      %p46 = pneg %p40
      %p47 = scmp.eq.s32.totalorder %s12, 1
      %p48 = por %p46, %p47
      %p49 = scmp.ne.s32.totalorder %s41, %s44
      %p50 = scmp.eq.s32.totalorder %s12, 0
      %p51 = por %p49, %p50
      %p52 = scmp.ne.s32.totalorder %s41, %s44
      %p53 = scmp.eq.s32.totalorder %s17, 1
      %p54 = por %p52, %p53
      %p55 = scmp.ne.s32.totalorder %s44, %s45
      %p56 = scmp.eq.s32.totalorder %s17, 0
      %p57 = por %p55, %p56
      %p58 = scmp.ne.s32.totalorder %s44, %s45
      %p59 = scmp.eq.s32.totalorder %s18, 1
      %p60 = por %p58, %p59
      %p62 = scmp.ne.s32.totalorder %s45, %s61
      %p63 = scmp.eq.s32.totalorder %s18, 0
      %p64 = por %p62, %p63
      %s65 = ssub.s32 %s19, %s38
      %s66 = ssub.s32 %s21, %s30
      %s67 = sor.u32 %s65, %s66
      %s68 = ssub.s32 %s20, %s34
      %s69 = sor.u32 %s67, %s68
      %p70 = scmp.eq.s32.totalorder %s69, 0
      %s72 = sadd.s32 %s71, 1
      %s73 = scalar_select %p70, %s71, %s72
      %p76 = pneg %p70
      %p77 = scmp.eq.s32.totalorder %s12, 1
      %p78 = por %p76, %p77
      %p79 = scmp.ne.s32.totalorder %s71, %s74
      %p80 = scmp.eq.s32.totalorder %s12, 0
      %p81 = por %p79, %p80
      %p82 = scmp.ne.s32.totalorder %s71, %s74
      %p83 = scmp.eq.s32.totalorder %s17, 1
      %p84 = por %p82, %p83
      %p85 = scmp.ne.s32.totalorder %s74, %s75
      %p86 = scmp.eq.s32.totalorder %s17, 0
      %p87 = por %p85, %p86
      %p88 = scmp.ne.s32.totalorder %s74, %s75
      %p89 = scmp.eq.s32.totalorder %s18, 1
      %p90 = por %p88, %p89
      %p92 = scmp.ne.s32.totalorder %s75, %s91
      %p93 = scmp.eq.s32.totalorder %s18, 0
      %p94 = por %p92, %p93
      %s96 = sadd.s32 %s95, 1
      %p99 = scmp.eq.s32.totalorder %s12, 1
      %p100 = scmp.ne.s32.totalorder %s95, %s97
      %p101 = scmp.eq.s32.totalorder %s12, 0
      %p102 = por %p100, %p101
      %p103 = scmp.ne.s32.totalorder %s95, %s97
      %p104 = scmp.eq.s32.totalorder %s17, 1
      %p105 = por %p103, %p104
      %p106 = scmp.ne.s32.totalorder %s97, %s98
      %p107 = scmp.eq.s32.totalorder %s17, 0
      %p108 = por %p106, %p107
      %p109 = scmp.ne.s32.totalorder %s97, %s98
      %p110 = scmp.eq.s32.totalorder %s18, 1
      %p111 = por %p109, %p110
      %p113 = scmp.ne.s32.totalorder %s98, %s112
      %p114 = scmp.eq.s32.totalorder %s18, 0
      %p115 = por %p113, %p114
      %s116 = ssub.s32 %s19, %s38
      %s117 = ssub.s32 %s20, %s34
      %s118 = sor.u32 %s116, %s117
      %p119 = scmp.eq.s32.totalorder %s118, 0
      %s121 = sadd.s32 %s120, 1
      %s122 = scalar_select %p119, %s120, %s121
      %p125 = pneg %p119
      %p126 = scmp.eq.s32.totalorder %s12, 1
      %p127 = por %p125, %p126
      %p128 = scmp.ne.s32.totalorder %s120, %s123
      %p129 = scmp.eq.s32.totalorder %s12, 0
      %p130 = por %p128, %p129
      %p131 = scmp.ne.s32.totalorder %s120, %s123
      %p132 = scmp.eq.s32.totalorder %s17, 1
      %p133 = por %p131, %p132
      %p134 = scmp.ne.s32.totalorder %s123, %s124
      %p135 = scmp.eq.s32.totalorder %s17, 0
      %p136 = por %p134, %p135
      %p137 = scmp.ne.s32.totalorder %s123, %s124
      %p138 = scmp.eq.s32.totalorder %s18, 1
      %p139 = por %p137, %p138
      %p141 = scmp.ne.s32.totalorder %s124, %s140
      %p142 = scmp.eq.s32.totalorder %s18, 0
      %p143 = por %p141, %p142
      %p144 = scmp.le.s32.totalorder 1, %s12
      %p145 = scmp.lt.s32.totalorder %s12, 3
      %p146 = pnand %p144, %p145
      %p147 = pneg %p146
      // Predicated region
      $region9: #{tpu_custom_call.1} parent=5 // pred_check
        _
      $region10: #{tpu_custom_call.1} parent=5 // pred_check_branch
        %149 = sbr.rel (%p146) target = $region12
      $region11: #{tpu_custom_call.1} parent=5 // pred_region
        %s150 = ssub.s32 %s12, 1
        // Predicated region
        $region13: #{tpu_custom_call.1} parent=11 // pred_check
          %p151 = pneg %p57
        $region14: #{tpu_custom_call.1} parent=11 // pred_check_branch
          %153 = sbr.rel (%p151) target = $region16
        $region15: #{tpu_custom_call.1} parent=11 // pred_region
          %p154 = scmp.lt.s32.totalorder %s24, 0
          %s155 = scalar_select %p154, %s24, 0
          %s156 = smul.addr %s155, 8
          %s157 = scalar_lea.vmem %s0, %s156
        $region16: #{tpu_custom_call.1} parent=11 // pred_fallthru
          _
        // Predicated region
        $region17: #{tpu_custom_call.1} parent=11 // pred_check
          %p158 = pneg %p108
        $region18: #{tpu_custom_call.1} parent=11 // pred_check_branch
          %160 = sbr.rel (%p158) target = $region20
        $region19: #{tpu_custom_call.1} parent=11 // pred_region
          _
        $region20: #{tpu_custom_call.1} parent=11 // pred_fallthru
          _
      $region12: #{tpu_custom_call.1} parent=5 // pred_fallthru
        _
      %p161 = scmp.lt.s32.totalorder %s12, 2
      // Predicated region
      $region21: #{tpu_custom_call.1} parent=5 // pred_check
        %p162 = pneg %p161
      $region22: #{tpu_custom_call.1} parent=5 // pred_check_branch
        %164 = sbr.rel (%p162) target = $region24
      $region23: #{tpu_custom_call.1} parent=5 // pred_region
        // Predicated region
        $region25: #{tpu_custom_call.1} parent=23 // pred_check
          %p165 = pneg %p81
        $region26: #{tpu_custom_call.1} parent=23 // pred_check_branch
          %167 = sbr.rel (%p165) target = $region28
        $region27: #{tpu_custom_call.1} parent=23 // pred_region
          %s168 = smul.u32 2, %s20
          %p169 = scmp.lt.s32.totalorder %s19, 1
          %s170 = scalar_select %p169, %s19, 1
          %p171 = scmp.lt.s32.totalorder %s21, 0
          %s172 = scalar_select %p171, %s21, 0
          %p173 = scmp.lt.s32.totalorder %s168, 1
          %s174 = scalar_select %p173, %s168, 1
          %s175 = smul.addr %s172, 2
          %s176 = sadd.s32 %s174, %s175
          %s177 = smul.addr %s170, 2
          %s178 = sadd.s32 %s176, %s177
          %s179 = smul.addr %s178, 4
          %s180 = scalar_lea.vmem %s1, %s179
          %s181 = smul.u32 2, %s20
        $region28: #{tpu_custom_call.1} parent=23 // pred_fallthru
          _
      $region24: #{tpu_custom_call.1} parent=5 // pred_fallthru
        _
      %p182 = scmp.le.s32.totalorder 1, %s12
      %p183 = scmp.lt.s32.totalorder %s12, 3
      %p184 = pnand %p182, %p183
      %p185 = pneg %p184
      // Predicated region
      $region29: #{tpu_custom_call.1} parent=5 // pred_check
        _
      $region30: #{tpu_custom_call.1} parent=5 // pred_check_branch
        %187 = sbr.rel (%p184) target = $region32
      $region31: #{tpu_custom_call.1} parent=5 // pred_region
        %s188 = ssub.s32 %s12, 1
        %p189 = scmp.lt.s32.totalorder %s24, 0
        %s190 = scalar_select %p189, %s24, 0
        %s191 = smul.addr %s190, 8
        %s192 = scalar_lea.vmem %s0, %s191
        %p193 = pneg %p57
        %p194 = pneg %p54
        %s195 = smul.u32 2, %s23
        %p196 = scmp.lt.s32.totalorder %s22, 1
        %s197 = scalar_select %p196, %s22, 1
        %p198 = scmp.lt.s32.totalorder %s24, 0
        %s199 = scalar_select %p198, %s24, 0
        %p200 = scmp.lt.s32.totalorder %s195, 1
        %s201 = scalar_select %p200, %s195, 1
        %s202 = smul.addr %s199, 2
        %s203 = sadd.s32 %s201, %s202
        %s204 = smul.addr %s197, 2
        %s205 = sadd.s32 %s203, %s204
        %s206 = smul.addr %s205, 4
        %s207 = scalar_lea.vmem %s1, %s206
        %p208 = pneg %p87
        %p209 = pneg %p84
        %p210 = pneg %p108
        %p211 = pneg %p105
        %p212 = pneg %p136
        %p213 = pneg %p133
        %s214 = sand.u32 %s123, 1
        %s215 = scalar_lea.sflag [#allocation4], %s214
        %s216 = sand.u32 %s123, 1
        %s217 = smul.addr %s216, 16
        %s218 = scalar_lea.vmem [#allocation3], %s217
        %p219 = scmp.lt.s32.totalorder %s24, 0
        %s220 = scalar_select %p219, %s24, 0
        %s221 = smul.addr %s220, 8
        %s222 = scalar_lea.vmem %s0, %s221
        %s223 = smul.u32 2, %s23
        %p224 = scmp.lt.s32.totalorder %s22, 1
        %s225 = scalar_select %p224, %s22, 1
        %p226 = scmp.lt.s32.totalorder %s24, 0
        %s227 = scalar_select %p226, %s24, 0
        %p228 = scmp.lt.s32.totalorder %s223, 1
        %s229 = scalar_select %p228, %s223, 1
        %s230 = smul.addr %s227, 2
        %s231 = sadd.s32 %s229, %s230
        %s232 = smul.addr %s225, 2
        %s233 = sadd.s32 %s231, %s232
        %s234 = smul.addr %s233, 4
        %s235 = scalar_lea.vmem %s1, %s234
        %s236 = smul.u32 2, %s23
        %s237 = smul.u32 2, %s23
        %p238 = scmp.eq.s32.totalorder %s24, 0
        // Predicated region
        $region33: #{tpu_custom_call.1} parent=31 // pred_check
          %p239 = pneg %p238
        $region34: #{tpu_custom_call.1} parent=31 // pred_check_branch
          %241 = sbr.rel (%p239) target = $region36
        $region35: #{tpu_custom_call.1} parent=31 // pred_region
          %242 = vst [vmem:[#allocation2] sm:$0xff] 0.0
          %243 = vst [vmem:[#allocation2 + $0x8] sm:$0xff] 0.0
        $region36: #{tpu_custom_call.1} parent=31 // pred_fallthru
          _
        %v244 = vld [vmem:[#allocation2] sm:$0xff]
        %v245 = vld [vmem:[#allocation2 + $0x8] sm:$0xff]
        %v246 = vld [vmem:[%s222] sm:$0xff]
        %v247 = vld [vmem:[%s235] sm:$0xff]
        %v249 = vcombine.high %v247, %v247
        %vm250 = vcmask 31744
        %v252 = vsel %vm250, %v246, 0
        %vm254 = vcmask 1043456
        %v255 = vsel %vm254, %v247, 0
        %v257 = vsel %vm254, %v249, 0
        %259 = vmatprep.subr.mxu0 %v257
        %260 = vmatpush1.msra.mxu0 %v255
        %261 = vmatprep.subr.mxu0 0.0
        %262 = vmatpush1.msra.mxu0 0.0
        %263 = vmatprep.subr.mxu0 0.0
        %264 = vmatpush1.msra.mxu0 0.0
        %265 = vmatprep.subr.mxu0 0.0
        %266 = vmatpush1.msra.mxu0 0.0
        %267 = vmatprep.subr.mxu0 0.0
        %268 = vmatpush1.msra.mxu0 0.0
        %269 = vmatprep.subr.mxu0 0.0
        %270 = vmatpush1.msra.mxu0 0.0
        %271 = vmatprep.subr.mxu0 0.0
        %272 = vmatpush1.msra.mxu0 0.0
        %273 = vmatprep.subr.mxu0 0.0
        %274 = vmatpush1.msra.mxu0 0.0
        %275 = vmatprep.subr.mxu0 0.0
        %276 = vmatpush1.msra.mxu0 0.0
        %277 = vmatprep.subr.mxu0 0.0
        %278 = vmatpush1.msra.mxu0 0.0
        %279 = vmatprep.subr.mxu0 0.0
        %280 = vmatpush1.msra.mxu0 0.0
        %281 = vmatprep.subr.mxu0 0.0
        %282 = vmatpush1.msra.mxu0 0.0
        %283 = vmatprep.subr.mxu0 0.0
        %284 = vmatpush1.msra.mxu0 0.0
        %285 = vmatprep.subr.mxu0 0.0
        %286 = vmatpush1.msra.mxu0 0.0
        %287 = vmatprep.subr.mxu0 0.0
        %288 = vmatpush1.msra.mxu0 0.0
        %289 = vmatprep.subr.mxu0 0.0
        %290 = vmatpush1.msra.mxu0 0.0
        %291 = vmatprep.subr.mxu0 0.0
        %292 = vmatpush1.msra.mxu0 0.0
        %293 = vmatprep.subr.mxu0 0.0
        %294 = vmatpush1.msra.mxu0 0.0
        %295 = vmatprep.subr.mxu0 0.0
        %296 = vmatpush1.msra.mxu0 0.0
        %297 = vmatprep.subr.mxu0 0.0
        %298 = vmatpush1.msra.mxu0 0.0
        %299 = vmatprep.subr.mxu0 0.0
        %300 = vmatpush1.msra.mxu0 0.0
        %301 = vmatprep.subr.mxu0 0.0
        %302 = vmatpush1.msra.mxu0 0.0
        %303 = vmatprep.subr.mxu0 0.0
        %304 = vmatpush1.msra.mxu0 0.0
        %305 = vmatprep.subr.mxu0 0.0
        %306 = vmatpush1.msra.mxu0 0.0
        %307 = vmatprep.subr.mxu0 0.0
        %308 = vmatpush1.msra.mxu0 0.0
        %309 = vmatprep.subr.mxu0 0.0
        %310 = vmatpush1.msra.mxu0 0.0
        %311 = vmatprep.subr.mxu0 0.0
        %312 = vmatpush1.msra.mxu0 0.0
        %313 = vmatprep.subr.mxu0 0.0
        %314 = vmatpush1.msra.mxu0 0.0
        %315 = vmatprep.subr.mxu0 0.0
        %316 = vmatpush1.msra.mxu0 0.0
        %317 = vmatprep.subr.mxu0 0.0
        %318 = vmatpush1.msra.mxu0 0.0
        %319 = vmatprep.subr.mxu0 0.0
        %320 = vmatpush1.msra.mxu0 0.0
        %321 = vmatprep.subr.mxu0 0.0
        %322 = vmatpush1.msra.mxu0 0.0
        %323 = vmatprep.mubr.f32.mxu0 0.0
        %324 = vmatmul.mubr.f32.gmra.mrb[0].mxu0 %v252
        %v325 = vpop.f32.mrb[0].mxu0
        %v326 = vadd.f32 0.0, %v325
        %v327 = vpop.f32.mrb[0].mxu0
        %v328 = vadd.f32 0.0, %v327
        %329 = vdwg.mxu0
        %v330 = vadd.f32 %v244, %v326
        %v331 = vadd.f32 %v245, %v328
        %332 = vst [vmem:[#allocation2] sm:$0xff] %v330
        %333 = vst [vmem:[#allocation2 + $0x8] sm:$0xff] %v331
        // Predicated region
        $region37: #{tpu_custom_call.1} parent=31 // pred_check
          %p334 = pneg %p238
        $region38: #{tpu_custom_call.1} parent=31 // pred_check_branch
          %336 = sbr.rel (%p334) target = $region40
        $region39: #{tpu_custom_call.1} parent=31 // pred_region
          %v337 = vld [vmem:[#allocation2] sm:$0xff]
          %v338 = vld [vmem:[#allocation2 + $0x8] sm:$0xff]
          %v339 = vld [vmem:[%s2] sm:$0xff]
          %341 = vset.pattern.permute.xlu0 0
          %342 = vperm.xlu0 %341, %v339
          %v343 = vpop.permute.xlu0 %342
          %v345 = vadd.f32 %v337, %v343
          %v346 = vadd.f32 %v338, %v343
          %v347 = vmax.f32 %v345, 0.0
          %v348 = vmax.f32 %v346, 0.0
          %349 = vst [vmem:[%s218] sm:$0xff] %v347
          %350 = vst [vmem:[%s218 + $0x8] sm:$0xff] %v348
        $region40: #{tpu_custom_call.1} parent=31 // pred_fallthru
          _
        %s351 = sand.u32 %s123, 1
        %s352 = scalar_lea.sflag [#allocation4], %s351
        %s353 = sand.u32 %s123, 1
        %s354 = smul.addr %s353, 16
        %s355 = scalar_lea.vmem [#allocation3], %s354
        // Predicated region
        $region41: #{tpu_custom_call.1} parent=31 // pred_check
          %p356 = pneg %p133
        $region42: #{tpu_custom_call.1} parent=31 // pred_check_branch
          %358 = sbr.rel (%p356) target = $region44
        $region43: #{tpu_custom_call.1} parent=31 // pred_region
          %s359 = smul.u32 2, %s23
          %s361 = ssub.s32 256, 256
          %362 = vsyncadd %s352, %s361
          %s363 = smul.addr %s22, 2
          %s364 = sadd.s32 %s359, %s363
          %s365 = smul.addr %s364, 128
          %s366 = scalar_lea.hbm %s3, %s365
          %s368 = sshll.u32 %s355, 4
          %s369 = int_to_ptr.vmem [resolvable:$true] %s368
          %371 = dma.vmem_to_hbm [thread:$0]  %s369, 256, %s366, %s352
        $region44: #{tpu_custom_call.1} parent=31 // pred_fallthru
          _
      $region32: #{tpu_custom_call.1} parent=5 // pred_fallthru
        _
      %p372 = scmp.le.s32.totalorder 2, %s12
      // Predicated region
      $region45: #{tpu_custom_call.1} parent=5 // pred_check
        %p373 = pneg %p372
      $region46: #{tpu_custom_call.1} parent=5 // pred_check_branch
        %375 = sbr.rel (%p373) target = $region48
      $region47: #{tpu_custom_call.1} parent=5 // pred_region
        %s376 = ssub.s32 %s12, 2
        // Predicated region
        $region49: #{tpu_custom_call.1} parent=47 // pred_check
          %p377 = pneg %p139
        $region50: #{tpu_custom_call.1} parent=47 // pred_check_branch
          %379 = sbr.rel (%p377) target = $region52
        $region51: #{tpu_custom_call.1} parent=47 // pred_region
          %s380 = sand.u32 %s124, 1
          %s381 = scalar_lea.sflag [#allocation4], %s380
          %s382 = sand.u32 %s124, 1
          %s383 = smul.addr %s382, 16
          %s384 = scalar_lea.vmem [#allocation3], %s383
          %385 = dma.done %s381, 256
        $region52: #{tpu_custom_call.1} parent=47 // pred_fallthru
          _
      $region48: #{tpu_custom_call.1} parent=5 // pred_fallthru
        _
    $region6: #{tpu_custom_call.1} parent=1 // loop_footer
      %s16 = sadd.s32 1, %s12
    $region7: #{tpu_custom_call.1} parent=1 // loop_footer_branch
      %11 = sbr.rel target = $region3
    $region8: #{tpu_custom_call.1} parent=1 // loop_exit
      _
    %386 = vsyncpa [#allocation4], 1
    %s387 = scalar_lea.sflag [#allocation4], 1
    %388 = vsyncpa %s387, 1

</llo_original>
